<compile_context>
chip_gen: v7x
topology: tpu7x:2x2x1
jax: 0.10.0
libtpu: 0.0.40
codegen_flags: <defaults>
</compile_context>

<pallas_src>
import math

import jax
import jax.numpy as jnp
from jax.experimental import pallas as pl
from jax.experimental.pallas import tpu as pltpu


def _relu_kernel(x_ref, o_ref):
    # One (block_rows, lane) VMEM tile; pure elementwise VPU op.
    x = x_ref[...]
    o_ref[...] = jnp.where(x < 0, jnp.zeros_like(x), x)


def relu_forward(x, *, block_rows=1024, lane=512):
    """ReLU forward for an arbitrary-shaped array, run as a Pallas TPU kernel."""
    orig_shape = x.shape
    total = int(math.prod(orig_shape)) if orig_shape else 1
    if total == 0:
        return x

    flat = x.reshape(-1)

    # Lane width: a multiple of 128 (lane-dense, unmasked stores); shrink for
    # tiny inputs so we never pad more than necessary.
    C = lane
    while C > 128 and total < C:
        C //= 2

    # Rows of the 2-D slab; pad only the sub-lane-width remainder (< C elems).
    rows = pl.cdiv(total, C)
    padded_total = rows * C
    if padded_total != total:
        flat = jnp.pad(flat, (0, padded_total - total))
    x2d = flat.reshape(rows, C)

    # Row tile: large to amortize per-step overhead.  If the whole input is
    # smaller than one tile, use all rows (block == full dim satisfies the
    # (8,128) rule).  Otherwise the block is (1024, 512): divisible by (8,128)
    # for f32 and (16,128) for bf16, and the ragged last grid step is handled
    # by Pallas (OOB writes discarded), so rows need no extra padding.
    br = min(block_rows, rows)
    grid = (pl.cdiv(rows, br),)

    out2d = pl.pallas_call(
        _relu_kernel,
        out_shape=jax.ShapeDtypeStruct((rows, C), x.dtype),
        grid_spec=pltpu.PrefetchScalarGridSpec(
            num_scalar_prefetch=0,
            grid=grid,
            in_specs=[pl.BlockSpec((br, C), lambda i: (i, 0))],
            out_specs=pl.BlockSpec((br, C), lambda i: (i, 0)),
        ),
        compiler_params=pltpu.CompilerParams(
            dimension_semantics=("parallel",),
        ),
    )(x2d)

    out_flat = out2d.reshape(-1)
    if padded_total != total:
        out_flat = out_flat[:total]
    return out_flat.reshape(orig_shape)


class ReLUPallas:
    """Mirror of the PyTorch ReLU Module; forward runs the Pallas kernel."""

    def __init__(self):
        pass

    def __call__(self, z):
        return self.forward(z)

    def forward(self, z):
        return relu_forward(z)


if __name__ == "__main__":
    key = jax.random.PRNGKey(0)

    # Small deterministic example: batch=2, channels=4, spatial=16x16.
    x = jax.random.normal(key, (2, 4, 16, 16), dtype=jnp.float32)

    layer = ReLUPallas()
    y = layer(x)
    y = jax.block_until_ready(y)

    # Reference check against plain JAX (same semantics as z * where(z<0,0,1)).
    y_ref = jnp.where(x < 0, 0.0, x)
    assert y.shape == x.shape
    assert y.dtype == x.dtype
    assert jnp.array_equal(y, y_ref)

    # Also exercise a shape whose element count is not a multiple of the lane
    # width (tail-padding path) to keep the ragged/padded logic covered.
    x2 = jax.random.normal(jax.random.PRNGKey(1), (3, 5, 7), dtype=jnp.float32)
    y2 = jax.block_until_ready(layer(x2))
    assert jnp.array_equal(y2, jnp.where(x2 < 0, 0.0, x2))

    print("KERNEL_OK")
</pallas_src>

<mosaic_0001>
module attributes {stable_mosaic.version = 11 : i64} {
  func.func @_relu_kernel(%arg0: i32, %arg1: memref<4x512xf32, #tpu.memory_space<vmem>>, %arg2: memref<4x512xf32, #tpu.memory_space<vmem>>) attributes {dimension_semantics = [#tpu.dimension_semantics<parallel>], iteration_bounds = array<i64: 1>, scalar_prefetch = 0 : i64, scratch_operands = 0 : i64, tpu.core_type = #tpu.core_type<tc>, window_params = [{transform_indices = @transform_0, window_bounds = array<i64: 4, 512>}, {transform_indices = @transform_1, window_bounds = array<i64: 4, 512>}]} {
    %c0 = arith.constant 0 : index
    %c0_0 = arith.constant 0 : index
    %0 = vector.load %arg1[%c0, %c0_0] : memref<4x512xf32, #tpu.memory_space<vmem>>, vector<4x512xf32>
    %cst = arith.constant 0.000000e+00 : f32
    %1 = vector.broadcast %cst : f32 to vector<4x512xf32>
    %2 = arith.cmpf olt, %0, %1 : vector<4x512xf32>
    %cst_1 = arith.constant 0.000000e+00 : f32
    %3 = vector.broadcast %cst_1 : f32 to vector<4x512xf32>
    %4 = arith.select %2, %3, %0 : vector<4x512xi1>, vector<4x512xf32>
    %c0_2 = arith.constant 0 : index
    %c0_3 = arith.constant 0 : index
    %5 = vector.load %arg2[%c0_2, %c0_3] : memref<4x512xf32, #tpu.memory_space<vmem>>, vector<4x512xf32>
    tpu.vector_store %arg2[%c0_2, %c0_3], %4 {strides = array<i32>} : memref<4x512xf32, #tpu.memory_space<vmem>>, vector<4x512xf32>,
    return
  }
  func.func @transform_0(%arg0: i32) -> (i32, i32) {
    %c0_i32 = arith.constant 0 : i32
    %c0_i32_0 = arith.constant 0 : i32
    return %arg0, %c0_i32 : i32, i32
  }
  func.func @transform_1(%arg0: i32) -> (i32, i32) {
    %c0_i32 = arith.constant 0 : i32
    %c0_i32_0 = arith.constant 0 : i32
    return %arg0, %c0_i32 : i32, i32
  }
}

</mosaic_0001>

<llo_original>
// kernel: tpu_custom_call.1
$region0: #{tpu_custom_call.1}
  #allocation0 [shape = 'u32[]', space=smem, size = 0x4, offset = 0x4, fixed_abs, tag = 'smem constant byte address 0x4 - core index']
  #allocation1 [shape = 'u32[144,128]{1,0:T(1,128)}', space=vmem, size = 0x12000, scoped, tag = 'internal scratch']
  %s0 = inlined_call_operand.hbm [shape: f32[4,512], index: 0, kind: input, shape index: {}]
  %s1 = inlined_call_operand.hbm [shape: f32[4,512], index: 1, kind: output, shape index: {}]
  %s2 = sld [smem:[#allocation0]]
  $region18: #{tpu_custom_call.1} parent=0
    _
  %s4 = ssub.s32 1, %s2
  %s5 = scalar_select 0, %s4, %s2
  $region1: #{tpu_custom_call.1} parent=0
    #allocation2 [shape = 'u8[8192]{0}', space=vmem, size = 0x2000, scoped, tag = 'input window, operand 0, single buffered']
    #allocation3 [shape = 's32[1]{0}', space=sflag, size = 0x4, scoped, tag = 'scoped memory for tpu_custom_call.1']
    #allocation4 [shape = 's32[1]{0}', space=sflag, size = 0x4, scoped, tag = 'scoped memory for tpu_custom_call.1']
    #allocation5 [shape = 'u8[8192]{0}', space=vmem, size = 0x2000, scoped, tag = 'output window, operand 0, single buffered']
    %6 = vsyncpa [#allocation3], 0
    %7 = vsyncpa [#allocation4], 0
    // Predicated region
    $region2: #{tpu_custom_call.1} parent=1 // pred_check
      _
    $region3: #{tpu_custom_call.1} parent=1 // pred_check_branch
      %9 = sbr.rel (0) target = $region5
    $region4: #{tpu_custom_call.1} parent=1 // pred_region
      %s11 = ssub.s32 256, 256
      %12 = vsyncadd [#allocation3], %s11
      %s14 = sshll.u32 [#allocation2], 4
      %s15 = int_to_ptr.vmem [resolvable:$true] %s14
      %17 = dma.hbm_to_vmem [thread:$0]  %s0, 256, %s15, [#allocation3]
    $region5: #{tpu_custom_call.1} parent=1 // pred_fallthru
      _
    // Predicated region
    $region6: #{tpu_custom_call.1} parent=1 // pred_check
      _
    $region7: #{tpu_custom_call.1} parent=1 // pred_check_branch
      %19 = sbr.rel (0) target = $region9
    $region8: #{tpu_custom_call.1} parent=1 // pred_region
      %20 = dma.done [#allocation3], 256
    $region9: #{tpu_custom_call.1} parent=1 // pred_fallthru
      _
    %v21 = vld [vmem:[#allocation2] sm:$0xff]
    %v22 = vld [vmem:[#allocation2 + $0x8] sm:$0xff]
    %vm23 = vcmp.lt.f32.partialorder %v21, 0.0
    %vm24 = vcmp.lt.f32.partialorder %v22, 0.0
    %v25 = vsel %vm23, 0.0, %v21
    %v26 = vsel %vm24, 0.0, %v22
    %27 = vst [vmem:[#allocation5] sm:$0xff] %v25
    %28 = vst [vmem:[#allocation5 + $0x8] sm:$0xff] %v26
    // Predicated region
    $region10: #{tpu_custom_call.1} parent=1 // pred_check
      _
    $region11: #{tpu_custom_call.1} parent=1 // pred_check_branch
      %30 = sbr.rel (0) target = $region13
    $region12: #{tpu_custom_call.1} parent=1 // pred_region
      %s32 = ssub.s32 256, 256
      %33 = vsyncadd [#allocation4], %s32
      %s35 = sshll.u32 [#allocation5], 4
      %s36 = int_to_ptr.vmem [resolvable:$true] %s35
      %38 = dma.vmem_to_hbm [thread:$0]  %s36, 256, %s1, [#allocation4]
    $region13: #{tpu_custom_call.1} parent=1 // pred_fallthru
      _
    // Predicated region
    $region14: #{tpu_custom_call.1} parent=1 // pred_check
      _
    $region15: #{tpu_custom_call.1} parent=1 // pred_check_branch
      %40 = sbr.rel (0) target = $region17
    $region16: #{tpu_custom_call.1} parent=1 // pred_region
      %41 = dma.done [#allocation4], 256
    $region17: #{tpu_custom_call.1} parent=1 // pred_fallthru
      _
    %42 = vsyncpa [#allocation3], 1
    %43 = vsyncpa [#allocation4], 1

</llo_original>
